<compile_context>
chip_gen: v6e
topology: v6e:2x2x1
jax: 0.10.0
libtpu: 0.0.40
codegen_flags: <defaults>
</compile_context>

<pallas_src>
import jax
import jax.numpy as jnp
import numpy as np
from jax.experimental import pallas as pl
from jax.experimental.pallas import tpu as pltpu


def _vq_kernel(x_ref, embed_ref, neg_half_sq_ref, q_ref, idx_ref):
    # x_ref:           (TN, D)  one tile of tokens, float32
    # embed_ref:       (K, D)   full codebook (grid-invariant)
    # neg_half_sq_ref: (1, K)   -0.5 * ||e_k||^2 (precomputed once in the wrapper)
    # q_ref:           (TN, D)  quantized tokens out
    # idx_ref:         (TN, 1)  selected code indices out (int32)
    x = x_ref[...]                                     # (TN, D)
    e = embed_ref[...]                                 # (K, D)

    # score[t, k] = x_t . e_k - 0.5*||e_k||^2 ; argmax_k == nearest code (Euclidean).
    scores = jax.lax.dot_general(
        x, e, (((1,), (1,)), ((), ())),                # contract D of both -> (TN, K)
        preferred_element_type=jnp.float32) + neg_half_sq_ref[...]

    best = jnp.max(scores, axis=-1, keepdims=True)                     # (TN, 1)
    k_iota = jax.lax.broadcasted_iota(jnp.int32, scores.shape, 1)      # (TN, K)
    num_codes = scores.shape[1]
    # first index achieving the max (matches torch/jnp argmax tie-breaking)
    idx = jnp.min(jnp.where(scores == best, k_iota, num_codes),
                  axis=-1, keepdims=True)                              # (TN, 1) int32

    onehot = (k_iota == idx).astype(jnp.float32)                       # (TN, K)
    # exact gather: one-hot @ codebook (f32 MXU)
    q_ref[...] = jnp.dot(onehot, e,
                         preferred_element_type=jnp.float32).astype(q_ref.dtype)
    idx_ref[...] = idx.astype(jnp.int32)


def vector_quantize(x, embed, *, tn=128):
    """Eval-mode VectorQuantize forward.

    x:     (B, N, D) tokens, channel-last (channel_last=True, project_in=Identity)
    embed: (K, D)    codebook (num_codebooks=1)
    Returns (quantize (B, N, D) f32, embed_ind (B, N) int32, loss (1,) f32).
    """
    b, n, d = x.shape
    k, d2 = embed.shape
    assert d == d2, "codebook_dim must equal dim (project_in is Identity)"

    x = x.astype(jnp.float32)            # the reference forward calls x.float()
    embed = embed.astype(jnp.float32)

    m = b * n
    x_flat = x.reshape(m, d)
    m_pad = ((m + tn - 1) // tn) * tn
    if m_pad != m:
        x_flat = jnp.pad(x_flat, ((0, m_pad - m), (0, 0)))

    neg_half_sq = (-0.5 * jnp.sum(embed * embed, axis=-1)).reshape(1, k)

    q_flat, idx_flat = pl.pallas_call(
        _vq_kernel,
        out_shape=(jax.ShapeDtypeStruct((m_pad, d), jnp.float32),
                   jax.ShapeDtypeStruct((m_pad, 1), jnp.int32)),
        grid_spec=pltpu.PrefetchScalarGridSpec(
            num_scalar_prefetch=0,
            grid=(m_pad // tn,),
            in_specs=[
                pl.BlockSpec((tn, d), lambda t: (t, 0)),   # x token tile
                pl.BlockSpec((k, d), lambda t: (0, 0)),    # codebook (grid-invariant)
                pl.BlockSpec((1, k), lambda t: (0, 0)),    # -0.5*||e||^2
            ],
            out_specs=[
                pl.BlockSpec((tn, d), lambda t: (t, 0)),   # quantized tokens
                pl.BlockSpec((tn, 1), lambda t: (t, 0)),   # code indices
            ],
        ),
        compiler_params=pltpu.CompilerParams(
            dimension_semantics=("parallel",),
            vmem_limit_bytes=32 * 1024 * 1024),
    )(x_flat, embed, neg_half_sq)

    quantize = q_flat[:m].reshape(b, n, d)
    embed_ind = idx_flat[:m, 0].reshape(b, n)
    # eval mode: commitment / orthogonal losses are skipped -> tensor([0.0])
    loss = jnp.zeros((1,), jnp.float32)
    return quantize, embed_ind, loss


def _reference(x, embed):
    """Pure-JAX mirror of EuclideanCodebook.forward at eval (defaults) for verification."""
    diff = x[:, :, None, :] - embed[None, None, :, :]        # (B, N, K, D)
    dist = -jnp.sqrt(jnp.sum(diff * diff, axis=-1))          # -cdist(x, embed, p=2)
    ind = jnp.argmax(dist, axis=-1)                          # gumbel_sample(temp=0) == argmax
    quant = embed[ind]                                       # batched_embedding gather
    return quant, ind


if __name__ == "__main__":
    # Small, TPU-friendly shapes (lane-dense: dim and codebook_size multiples of 128).
    B, N, D, K = 2, 128, 128, 256
    key = jax.random.PRNGKey(0)
    kx, ke = jax.random.split(key)
    x = jax.random.normal(kx, (B, N, D), jnp.float32)
    embed = jax.random.normal(ke, (K, D), jnp.float32)

    quant, ind, loss = vector_quantize(x, embed)
    quant, ind, loss = jax.block_until_ready((quant, ind, loss))

    ref_q, ref_i = jax.block_until_ready(_reference(x, embed))

    np.testing.assert_array_equal(np.asarray(ind), np.asarray(ref_i))
    np.testing.assert_allclose(np.asarray(quant), np.asarray(ref_q),
                               rtol=1e-4, atol=1e-4)
    assert float(loss[0]) == 0.0
    # TODO(synk): training-time EMA codebook update / kmeans init / dead-code expiry are
    # host-side stateful logic and intentionally not implemented in the kernel.
    print("KERNEL_OK")
</pallas_src>

<mosaic_0001>
module attributes {stable_mosaic.version = 11 : i64} {
  func.func @_vq_kernel(%arg0: i32, %arg1: memref<128x128xf32, #tpu.memory_space<vmem>>, %arg2: memref<256x128xf32, #tpu.memory_space<vmem>>, %arg3: memref<1x256xf32, #tpu.memory_space<vmem>>, %arg4: memref<128x128xf32, #tpu.memory_space<vmem>>, %arg5: memref<128x1xi32, #tpu.memory_space<vmem>>) attributes {dimension_semantics = [#tpu.dimension_semantics<parallel>], iteration_bounds = array<i64: 2>, scalar_prefetch = 0 : i64, scratch_operands = 0 : i64, tpu.core_type = #tpu.core_type<tc>, window_params = [{transform_indices = @transform_0, window_bounds = array<i64: 128, 128>}, {pipeline_mode = #tpu.pipeline_mode<synchronous>, transform_indices = @transform_1, window_bounds = array<i64: 256, 128>}, {pipeline_mode = #tpu.pipeline_mode<synchronous>, transform_indices = @transform_2, window_bounds = array<i64: 1, 256>}, {transform_indices = @transform_3, window_bounds = array<i64: 128, 128>}, {transform_indices = @transform_4, window_bounds = array<i64: 128, 1>}]} {
    %c0 = arith.constant 0 : index
    %c0_0 = arith.constant 0 : index
    %0 = vector.load %arg1[%c0, %c0_0] : memref<128x128xf32, #tpu.memory_space<vmem>>, vector<128x128xf32>
    %c0_1 = arith.constant 0 : index
    %c0_2 = arith.constant 0 : index
    %1 = vector.load %arg2[%c0_1, %c0_2] : memref<256x128xf32, #tpu.memory_space<vmem>>, vector<256x128xf32>
    %cst = arith.constant dense<0.000000e+00> : vector<128x256xf32>
    %2 = tpu.matmul %0, %1, %cst {dimension_numbers = #tpu.dot_dimension_numbers<[1], [1], [0], [0], [0, 0, 1, 0], [], []>} : vector<128x128xf32>, vector<256x128xf32>, vector<128x256xf32> -> vector<128x256xf32>
    %c0_3 = arith.constant 0 : index
    %c0_4 = arith.constant 0 : index
    %3 = vector.load %arg3[%c0_3, %c0_4] : memref<1x256xf32, #tpu.memory_space<vmem>>, vector<1x256xf32>
    %4 = vector.broadcast %3 : vector<1x256xf32> to vector<128x256xf32>
    %5 = arith.addf %2, %4 : vector<128x256xf32>
    %cst_5 = arith.constant dense<0xFF800000> : vector<128xf32>
    %6 = vector.multi_reduction <maximumf>, %5, %cst_5 [1] : vector<128x256xf32> to vector<128xf32>
    %7 = vector.shape_cast %6 : vector<128xf32> to vector<128x1xf32>
    %8 = tpu.iota {dimensions = array<i32: 1>} : vector<128x256xi32>
    %9 = vector.broadcast %7 : vector<128x1xf32> to vector<128x256xf32>
    %10 = arith.cmpf oeq, %5, %9 : vector<128x256xf32>
    %c256_i32 = arith.constant 256 : i32
    %11 = vector.broadcast %c256_i32 : i32 to vector<128x256xi32>
    %12 = arith.select %10, %8, %11 : vector<128x256xi1>, vector<128x256xi32>
    %cst_6 = arith.constant dense<2147483647> : vector<128xi32>
    %13 = vector.multi_reduction <minsi>, %12, %cst_6 [1] : vector<128x256xi32> to vector<128xi32>
    %14 = vector.shape_cast %13 : vector<128xi32> to vector<128x1xi32>
    %15 = vector.broadcast %14 : vector<128x1xi32> to vector<128x256xi32>
    %16 = arith.cmpi eq, %8, %15 : vector<128x256xi32>
    %17 = arith.extui %16 : vector<128x256xi1> to vector<128x256xi32>
    %18 = arith.sitofp %17 : vector<128x256xi32> to vector<128x256xf32>
    %cst_7 = arith.constant dense<0.000000e+00> : vector<128x128xf32>
    %19 = tpu.matmul %18, %1, %cst_7 {dimension_numbers = #tpu.dot_dimension_numbers<[1], [0], [0], [1], [0, 0, 1, 1], [], []>} : vector<128x256xf32>, vector<256x128xf32>, vector<128x128xf32> -> vector<128x128xf32>
    %c0_8 = arith.constant 0 : index
    %c0_9 = arith.constant 0 : index
    %20 = vector.load %arg4[%c0_8, %c0_9] : memref<128x128xf32, #tpu.memory_space<vmem>>, vector<128x128xf32>
    tpu.vector_store %arg4[%c0_8, %c0_9], %19 {strides = array<i32>} : memref<128x128xf32, #tpu.memory_space<vmem>>, vector<128x128xf32>,
    %c0_10 = arith.constant 0 : index
    %c0_11 = arith.constant 0 : index
    %21 = vector.load %arg5[%c0_10, %c0_11] : memref<128x1xi32, #tpu.memory_space<vmem>>, vector<128x1xi32>
    tpu.vector_store %arg5[%c0_10, %c0_11], %14 {strides = array<i32>} : memref<128x1xi32, #tpu.memory_space<vmem>>, vector<128x1xi32>,
    return
  }
  func.func @transform_0(%arg0: i32) -> (i32, i32) {
    %c0_i32 = arith.constant 0 : i32
    %c0_i32_0 = arith.constant 0 : i32
    return %arg0, %c0_i32 : i32, i32
  }
  func.func @transform_1(%arg0: i32) -> (i32, i32) {
    %c0_i32 = arith.constant 0 : i32
    %c0_i32_0 = arith.constant 0 : i32
    %c0_i32_1 = arith.constant 0 : i32
    return %c0_i32, %c0_i32_0 : i32, i32
  }
  func.func @transform_2(%arg0: i32) -> (i32, i32) {
    %c0_i32 = arith.constant 0 : i32
    %c0_i32_0 = arith.constant 0 : i32
    %c0_i32_1 = arith.constant 0 : i32
    return %c0_i32, %c0_i32_0 : i32, i32
  }
  func.func @transform_3(%arg0: i32) -> (i32, i32) {
    %c0_i32 = arith.constant 0 : i32
    %c0_i32_0 = arith.constant 0 : i32
    return %arg0, %c0_i32 : i32, i32
  }
  func.func @transform_4(%arg0: i32) -> (i32, i32) {
    %c0_i32 = arith.constant 0 : i32
    %c0_i32_0 = arith.constant 0 : i32
    return %arg0, %c0_i32 : i32, i32
  }
}

</mosaic_0001>

<llo_original>
// kernel: tpu_custom_call.1
$region0: #{tpu_custom_call.1}
  #allocation0 [shape = 'u32[]', space=smem, size = 0x4, offset = 0x4, fixed_abs, tag = 'smem constant byte address 0x4 - core index']
  #allocation1 [shape = 'u32[144,128]{1,0:T(1,128)}', space=vmem, size = 0x12000, scoped, tag = 'internal scratch']
  %s0 = inlined_call_operand.hbm [shape: f32[256,128], index: 0, kind: input, shape index: {}]
  %s1 = inlined_call_operand.hbm [shape: f32[256,128], index: 1, kind: input, shape index: {}]
  %s2 = inlined_call_operand.vmem [shape: f32[1,256], index: 2, kind: input, shape index: {}]
  %s3 = inlined_call_operand.hbm [shape: f32[256,128], index: 3, kind: output, shape index: {0}]
  %s4 = inlined_call_operand.vmem [shape: s32[256,1], index: 4, kind: output, shape index: {1}]
  %5 = xla_tuple %s3, %s4
  %s6 = sld [smem:[#allocation0]]
  $region61: #{tpu_custom_call.1} parent=0
    _
  %s8 = ssub.s32 1, %s6
  %s9 = scalar_select 0, %s8, %s6
  $region1: #{tpu_custom_call.1} parent=0
    #allocation2 [shape = 'u8[131072]{0}', space=vmem, size = 0x20000, scoped, tag = 'input window, operand 0']
    #allocation3 [shape = 's32[2]{0}', space=sflag, size = 0x8, scoped, tag = 'scoped memory for tpu_custom_call.1']
    #allocation4 [shape = 's32[2]{0}', space=sflag, size = 0x8, scoped, tag = 'scoped memory for tpu_custom_call.1']
    #allocation5 [shape = 'u8[131072]{0}', space=vmem, size = 0x20000, scoped, tag = 'input window, operand 1, single buffered']
    #allocation6 [shape = 's32[1]{0}', space=sflag, size = 0x4, scoped, tag = 'scoped memory for tpu_custom_call.1']
    #allocation7 [shape = 'u8[131072]{0}', space=vmem, size = 0x20000, scoped, tag = 'output window, operand 0']
    %10 = vsyncpa [#allocation3], 0
    %s11 = scalar_lea.sflag [#allocation3], 1
    %12 = vsyncpa %s11, 0
    %13 = vsyncpa [#allocation6], 0
    %14 = vsyncpa [#allocation4], 0
    %s15 = scalar_lea.sflag [#allocation4], 1
    %16 = vsyncpa %s15, 0
    loop: start=0, step=1, limit=4
    $region2: #{tpu_custom_call.1} parent=1 // loop_pre_header
      _
    $region3: #{tpu_custom_call.1} parent=1 // loop_header
      %s18 = sphi 0, %s22
      %p19 = scmp.ge.s32.totalorder %s18, 4
      %s28 = sphi 0, %s30
      %s31 = sphi 0, %s28
      %s32 = sphi 0, %s31
      %s48 = sphi 0, %s32
      %s52 = sphi 0, %s52
      %s54 = sphi 0, %s52
      %s55 = sphi 0, %s54
      %s69 = sphi 0, %s55
      %s73 = sphi 0, %s73
      %s75 = sphi 0, %s73
      %s76 = sphi 0, %s75
      %s90 = sphi 0, %s76
      %s96 = sphi 0, %s98
      %s99 = sphi 0, %s96
      %s100 = sphi 0, %s99
      %s116 = sphi 0, %s100
      %s122 = sphi 0, %s124
      %s125 = sphi 0, %s122
      %s126 = sphi 0, %s125
      %s142 = sphi 0, %s126
    $region4: #{tpu_custom_call.1} parent=1 // loop_header_branch
      %21 = sbr.rel (%p19) target = $region8
    $region5: #{tpu_custom_call.1} parent=1 // loop_body
      %s23 = ssub.s32 %s18, 1
      %s24 = ssub.s32 %s18, 2
      %s25 = sadd.s32 %s18, 1
      %s26 = ssub.s32 %s18, %s25
      %p27 = scmp.eq.s32.totalorder %s26, 0
      %s29 = sadd.s32 %s28, 1
      %s30 = scalar_select %p27, %s28, %s29
      %p33 = pneg %p27
      %p34 = scmp.eq.s32.totalorder %s18, 1
      %p35 = por %p33, %p34
      %p36 = scmp.ne.s32.totalorder %s28, %s31
      %p37 = scmp.eq.s32.totalorder %s18, 0
      %p38 = por %p36, %p37
      %p39 = scmp.ne.s32.totalorder %s28, %s31
      %p40 = scmp.eq.s32.totalorder %s23, 1
      %p41 = por %p39, %p40
      %p42 = scmp.ne.s32.totalorder %s31, %s32
      %p43 = scmp.eq.s32.totalorder %s23, 0
      %p44 = por %p42, %p43
      %p45 = scmp.ne.s32.totalorder %s31, %s32
      %p46 = scmp.eq.s32.totalorder %s24, 1
      %p47 = por %p45, %p46
      %p49 = scmp.ne.s32.totalorder %s32, %s48
      %p50 = scmp.eq.s32.totalorder %s24, 0
      %p51 = por %p49, %p50
      %s53 = sadd.s32 %s52, 1
      %p56 = scmp.eq.s32.totalorder %s18, 1
      %p57 = scmp.ne.s32.totalorder %s52, %s54
      %p58 = scmp.eq.s32.totalorder %s18, 0
      %p59 = por %p57, %p58
      %p60 = scmp.ne.s32.totalorder %s52, %s54
      %p61 = scmp.eq.s32.totalorder %s23, 1
      %p62 = por %p60, %p61
      %p63 = scmp.ne.s32.totalorder %s54, %s55
      %p64 = scmp.eq.s32.totalorder %s23, 0
      %p65 = por %p63, %p64
      %p66 = scmp.ne.s32.totalorder %s54, %s55
      %p67 = scmp.eq.s32.totalorder %s24, 1
      %p68 = por %p66, %p67
      %p70 = scmp.ne.s32.totalorder %s55, %s69
      %p71 = scmp.eq.s32.totalorder %s24, 0
      %p72 = por %p70, %p71
      %s74 = sadd.s32 %s73, 1
      %p77 = scmp.eq.s32.totalorder %s18, 1
      %p78 = scmp.ne.s32.totalorder %s73, %s75
      %p79 = scmp.eq.s32.totalorder %s18, 0
      %p80 = por %p78, %p79
      %p81 = scmp.ne.s32.totalorder %s73, %s75
      %p82 = scmp.eq.s32.totalorder %s23, 1
      %p83 = por %p81, %p82
      %p84 = scmp.ne.s32.totalorder %s75, %s76
      %p85 = scmp.eq.s32.totalorder %s23, 0
      %p86 = por %p84, %p85
      %p87 = scmp.ne.s32.totalorder %s75, %s76
      %p88 = scmp.eq.s32.totalorder %s24, 1
      %p89 = por %p87, %p88
      %p91 = scmp.ne.s32.totalorder %s76, %s90
      %p92 = scmp.eq.s32.totalorder %s24, 0
      %p93 = por %p91, %p92
      %s94 = ssub.s32 %s18, %s25
      %p95 = scmp.eq.s32.totalorder %s94, 0
      %s97 = sadd.s32 %s96, 1
      %s98 = scalar_select %p95, %s96, %s97
      %p101 = pneg %p95
      %p102 = scmp.eq.s32.totalorder %s18, 1
      %p103 = por %p101, %p102
      %p104 = scmp.ne.s32.totalorder %s96, %s99
      %p105 = scmp.eq.s32.totalorder %s18, 0
      %p106 = por %p104, %p105
      %p107 = scmp.ne.s32.totalorder %s96, %s99
      %p108 = scmp.eq.s32.totalorder %s23, 1
      %p109 = por %p107, %p108
      %p110 = scmp.ne.s32.totalorder %s99, %s100
      %p111 = scmp.eq.s32.totalorder %s23, 0
      %p112 = por %p110, %p111
      %p113 = scmp.ne.s32.totalorder %s99, %s100
      %p114 = scmp.eq.s32.totalorder %s24, 1
      %p115 = por %p113, %p114
      %p117 = scmp.ne.s32.totalorder %s100, %s116
      %p118 = scmp.eq.s32.totalorder %s24, 0
      %p119 = por %p117, %p118
      %s120 = ssub.s32 %s18, %s25
      %p121 = scmp.eq.s32.totalorder %s120, 0
      %s123 = sadd.s32 %s122, 1
      %s124 = scalar_select %p121, %s122, %s123
      %p127 = pneg %p121
      %p128 = scmp.eq.s32.totalorder %s18, 1
      %p129 = por %p127, %p128
      %p130 = scmp.ne.s32.totalorder %s122, %s125
      %p131 = scmp.eq.s32.totalorder %s18, 0
      %p132 = por %p130, %p131
      %p133 = scmp.ne.s32.totalorder %s122, %s125
      %p134 = scmp.eq.s32.totalorder %s23, 1
      %p135 = por %p133, %p134
      %p136 = scmp.ne.s32.totalorder %s125, %s126
      %p137 = scmp.eq.s32.totalorder %s23, 0
      %p138 = por %p136, %p137
      %p139 = scmp.ne.s32.totalorder %s125, %s126
      %p140 = scmp.eq.s32.totalorder %s24, 1
      %p141 = por %p139, %p140
      %p143 = scmp.ne.s32.totalorder %s126, %s142
      %p144 = scmp.eq.s32.totalorder %s24, 0
      %p145 = por %p143, %p144
      %p146 = scmp.le.s32.totalorder 1, %s18
      %p147 = scmp.lt.s32.totalorder %s18, 3
      %p148 = pnand %p146, %p147
      %p149 = pneg %p148
      // Predicated region
      $region9: #{tpu_custom_call.1} parent=5 // pred_check
        _
      $region10: #{tpu_custom_call.1} parent=5 // pred_check_branch
        %151 = sbr.rel (%p148) target = $region12
      $region11: #{tpu_custom_call.1} parent=5 // pred_region
        %s152 = ssub.s32 %s18, 1
        // Predicated region
        $region13: #{tpu_custom_call.1} parent=11 // pred_check
          %p153 = pneg %p65
        $region14: #{tpu_custom_call.1} parent=11 // pred_check_branch
          %155 = sbr.rel (%p153) target = $region16
        $region15: #{tpu_custom_call.1} parent=11 // pred_region
          %s157 = ssub.s32 4096, 4096
          %158 = vsyncadd [#allocation6], %s157
          %s159 = sshll.u32 [#allocation5], 4
          %s160 = int_to_ptr.vmem [resolvable:$true] %s159
          %165 = dma.hbm_to_vmem [thread:$0]  %s1, 4096, %s160, [#allocation6], 128, 128, 8
        $region16: #{tpu_custom_call.1} parent=11 // pred_fallthru
          _
        // Predicated region
        $region17: #{tpu_custom_call.1} parent=11 // pred_check
          %p166 = pneg %p86
        $region18: #{tpu_custom_call.1} parent=11 // pred_check_branch
          %168 = sbr.rel (%p166) target = $region20
        $region19: #{tpu_custom_call.1} parent=11 // pred_region
          _
        $region20: #{tpu_custom_call.1} parent=11 // pred_fallthru
          _
      $region12: #{tpu_custom_call.1} parent=5 // pred_fallthru
        _
      %p169 = scmp.lt.s32.totalorder %s18, 2
      // Predicated region
      $region21: #{tpu_custom_call.1} parent=5 // pred_check
        %p170 = pneg %p169
      $region22: #{tpu_custom_call.1} parent=5 // pred_check_branch
        %172 = sbr.rel (%p170) target = $region24
      $region23: #{tpu_custom_call.1} parent=5 // pred_region
        // Predicated region
        $region25: #{tpu_custom_call.1} parent=23 // pred_check
          %p173 = pneg %p38
        $region26: #{tpu_custom_call.1} parent=23 // pred_check_branch
          %175 = sbr.rel (%p173) target = $region28
        $region27: #{tpu_custom_call.1} parent=23 // pred_region
          %s176 = sand.u32 %s28, 1
          %s177 = scalar_lea.sflag [#allocation3], %s176
          %s178 = sand.u32 %s28, 1
          %s179 = smul.addr %s178, 128
          %s180 = scalar_lea.vmem [#allocation2], %s179
          %s181 = smul.u32 16, %s18
          %s183 = ssub.s32 2048, 2048
          %184 = vsyncadd %s177, %s183
          %s185 = smul.addr %s181, 128
          %s186 = scalar_lea.hbm %s0, %s185
          %s187 = sshll.u32 %s180, 4
          %s188 = int_to_ptr.vmem [resolvable:$true] %s187
          %193 = dma.hbm_to_vmem [thread:$0]  %s186, 2048, %s188, %s177, 128, 128, 8
        $region28: #{tpu_custom_call.1} parent=23 // pred_fallthru
          _
      $region24: #{tpu_custom_call.1} parent=5 // pred_fallthru
        _
      %p194 = scmp.le.s32.totalorder 1, %s18
      %p195 = scmp.lt.s32.totalorder %s18, 3
      %p196 = pnand %p194, %p195
      %p197 = pneg %p196
      // Predicated region
      $region29: #{tpu_custom_call.1} parent=5 // pred_check
        _
      $region30: #{tpu_custom_call.1} parent=5 // pred_check_branch
        %199 = sbr.rel (%p196) target = $region32
      $region31: #{tpu_custom_call.1} parent=5 // pred_region
        %s200 = ssub.s32 %s18, 1
        %s201 = sand.u32 %s31, 1
        %s202 = scalar_lea.sflag [#allocation3], %s201
        %s203 = sand.u32 %s31, 1
        %s204 = smul.addr %s203, 128
        %s205 = scalar_lea.vmem [#allocation2], %s204
        // Predicated region
        $region33: #{tpu_custom_call.1} parent=31 // pred_check
          %p206 = pneg %p44
        $region34: #{tpu_custom_call.1} parent=31 // pred_check_branch
          %208 = sbr.rel (%p206) target = $region36
        $region35: #{tpu_custom_call.1} parent=31 // pred_region
          %209 = dma.done %s202, 2048
        $region36: #{tpu_custom_call.1} parent=31 // pred_fallthru
          _
        // Predicated region
        $region37: #{tpu_custom_call.1} parent=31 // pred_check
          %p210 = pneg %p65
        $region38: #{tpu_custom_call.1} parent=31 // pred_check_branch
          %212 = sbr.rel (%p210) target = $region40
        $region39: #{tpu_custom_call.1} parent=31 // pred_region
          %213 = dma.done [#allocation6], 4096
        $region40: #{tpu_custom_call.1} parent=31 // pred_fallthru
          _
        %s214 = sand.u32 %s31, 1
        %s215 = scalar_lea.sflag [#allocation3], %s214
        %s216 = sand.u32 %s31, 1
        %s217 = smul.addr %s216, 128
        %s218 = scalar_lea.vmem [#allocation2], %s217
        %p219 = pneg %p44
        %p220 = pneg %p41
        %p221 = pneg %p65
        %p222 = pneg %p62
        %p223 = pneg %p86
        %p224 = pneg %p83
        %p225 = pneg %p112
        %p226 = pneg %p109
        %s227 = sand.u32 %s99, 1
        %s228 = scalar_lea.sflag [#allocation4], %s227
        %s229 = sand.u32 %s99, 1
        %s230 = smul.addr %s229, 128
        %s231 = scalar_lea.vmem [#allocation7], %s230
        %p232 = pneg %p138
        %p233 = pneg %p135
        %s234 = smul.u32 16, %s23
        %p235 = scmp.lt.s32.totalorder %s234, 31
        %s236 = scalar_select %p235, %s234, 31
        %s237 = smul.addr %s236, 8
        %s238 = scalar_lea.vmem %s4, %s237
        %s239 = smul.u32 16, %s23
        %s240 = smul.u32 16, %s23
        %s241 = smul.u32 16, %s23
        %p242 = scmp.lt.s32.totalorder %s241, 31
        %s243 = scalar_select %p242, %s241, 31
        %s244 = smul.addr %s243, 8
        %s245 = scalar_lea.vmem %s4, %s244
        %s246 = smul.u32 16, %s23
        %v247 = vld [vmem:[%s205] sm:$0xff]
        %v248 = vld [vmem:[%s205 + $0x8] sm:$0xff]
        %v249 = vld [vmem:[%s205 + $0x10] sm:$0xff]
        %v250 = vld [vmem:[%s205 + $0x18] sm:$0xff]
        %v251 = vld [vmem:[%s205 + $0x20] sm:$0xff]
        %v252 = vld [vmem:[%s205 + $0x28] sm:$0xff]
        %v253 = vld [vmem:[%s205 + $0x30] sm:$0xff]
        %v254 = vld [vmem:[%s205 + $0x38] sm:$0xff]
        %v255 = vld [vmem:[%s205 + $0x40] sm:$0xff]
        %v256 = vld [vmem:[%s205 + $0x48] sm:$0xff]
        %v257 = vld [vmem:[%s205 + $0x50] sm:$0xff]
        %v258 = vld [vmem:[%s205 + $0x58] sm:$0xff]
        %v259 = vld [vmem:[%s205 + $0x60] sm:$0xff]
        %v260 = vld [vmem:[%s205 + $0x68] sm:$0xff]
        %v261 = vld [vmem:[%s205 + $0x70] sm:$0xff]
        %v262 = vld [vmem:[%s205 + $0x78] sm:$0xff]
        %v263 = vld [vmem:[#allocation5] sm:$0xff]
        %v264 = vld [vmem:[#allocation5 + $0x8] sm:$0xff]
        %v265 = vld [vmem:[#allocation5 + $0x10] sm:$0xff]
        %v266 = vld [vmem:[#allocation5 + $0x18] sm:$0xff]
        %v267 = vld [vmem:[#allocation5 + $0x20] sm:$0xff]
        %v268 = vld [vmem:[#allocation5 + $0x28] sm:$0xff]
        %v269 = vld [vmem:[#allocation5 + $0x30] sm:$0xff]
        %v270 = vld [vmem:[#allocation5 + $0x38] sm:$0xff]
        %v271 = vld [vmem:[#allocation5 + $0x40] sm:$0xff]
        %v272 = vld [vmem:[#allocation5 + $0x48] sm:$0xff]
        %v273 = vld [vmem:[#allocation5 + $0x50] sm:$0xff]
        %v274 = vld [vmem:[#allocation5 + $0x58] sm:$0xff]
        %v275 = vld [vmem:[#allocation5 + $0x60] sm:$0xff]
        %v276 = vld [vmem:[#allocation5 + $0x68] sm:$0xff]
        %v277 = vld [vmem:[#allocation5 + $0x70] sm:$0xff]
        %v278 = vld [vmem:[#allocation5 + $0x78] sm:$0xff]
        %v279 = vld [vmem:[#allocation5 + $0x80] sm:$0xff]
        %v280 = vld [vmem:[#allocation5 + $0x88] sm:$0xff]
        %v281 = vld [vmem:[#allocation5 + $0x90] sm:$0xff]
        %v282 = vld [vmem:[#allocation5 + $0x98] sm:$0xff]
        %v283 = vld [vmem:[#allocation5 + $0xa0] sm:$0xff]
        %v284 = vld [vmem:[#allocation5 + $0xa8] sm:$0xff]
        %v285 = vld [vmem:[#allocation5 + $0xb0] sm:$0xff]
        %v286 = vld [vmem:[#allocation5 + $0xb8] sm:$0xff]
        %v287 = vld [vmem:[#allocation5 + $0xc0] sm:$0xff]
        %v288 = vld [vmem:[#allocation5 + $0xc8] sm:$0xff]
        %v289 = vld [vmem:[#allocation5 + $0xd0] sm:$0xff]
        %v290 = vld [vmem:[#allocation5 + $0xd8] sm:$0xff]
        %v291 = vld [vmem:[#allocation5 + $0xe0] sm:$0xff]
        %v292 = vld [vmem:[#allocation5 + $0xe8] sm:$0xff]
        %v293 = vld [vmem:[#allocation5 + $0xf0] sm:$0xff]
        %v294 = vld [vmem:[#allocation5 + $0xf8] sm:$0xff]
        %v295 = vld [vmem:[%s2] sm:$0x3]
        %v297 = vlaneseq
        %v298 = vshrl.u32 %v297, 7
        %v299 = vsub.s32 0, %v298
        %v300 = vrot.slane %v295, %v299
        %v301 = vlaneseq
        %v302 = vshrl.u32 %v301, 7
        %v303 = vsub.s32 1, %v302
        %v304 = vrot.slane %v295, %v303
        %307 = vmatprep.subr.mxu0 0.0
        %308 = vmatpush1.xpose.msra.mxu0 %v278
        %309 = vmatprep.subr.mxu0 0.0
        %310 = vmatpush1.xpose.msra.mxu0 %v277
        %311 = vmatprep.subr.mxu0 0.0
        %312 = vmatpush1.xpose.msra.mxu0 %v276
        %313 = vmatprep.subr.mxu0 0.0
        %314 = vmatpush1.xpose.msra.mxu0 %v275
        %315 = vmatprep.subr.mxu0 0.0
        %316 = vmatpush1.xpose.msra.mxu0 %v274
        %317 = vmatprep.subr.mxu0 0.0
        %318 = vmatpush1.xpose.msra.mxu0 %v273
        %319 = vmatprep.subr.mxu0 0.0
        %320 = vmatpush1.xpose.msra.mxu0 %v272
        %321 = vmatprep.subr.mxu0 0.0
        %322 = vmatpush1.xpose.msra.mxu0 %v271
        %323 = vmatprep.subr.mxu0 0.0
        %324 = vmatpush1.xpose.msra.mxu0 %v270
        %325 = vmatprep.subr.mxu0 0.0
        %326 = vmatpush1.xpose.msra.mxu0 %v269
        %327 = vmatprep.subr.mxu0 0.0
        %328 = vmatpush1.xpose.msra.mxu0 %v268
        %329 = vmatprep.subr.mxu0 0.0
        %330 = vmatpush1.xpose.msra.mxu0 %v267
        %331 = vmatprep.subr.mxu0 0.0
        %332 = vmatpush1.xpose.msra.mxu0 %v266
        %333 = vmatprep.subr.mxu0 0.0
        %334 = vmatpush1.xpose.msra.mxu0 %v265
        %335 = vmatprep.subr.mxu0 0.0
        %336 = vmatpush1.xpose.msra.mxu0 %v264
        %337 = vmatprep.subr.mxu0 0.0
        %338 = vmatpush1.xpose.msra.mxu0 %v263
        %339 = vmatprep.subr.mxu0 0.0
        %340 = vmatpush2.xpose.msra.mxu0 %v294
        %341 = vmatprep.subr.mxu0 0.0
        %342 = vmatpush2.xpose.msra.mxu0 %v293
        %343 = vmatprep.subr.mxu0 0.0
        %344 = vmatpush2.xpose.msra.mxu0 %v292
        %345 = vmatprep.subr.mxu0 0.0
        %346 = vmatpush2.xpose.msra.mxu0 %v291
        %347 = vmatprep.subr.mxu0 0.0
        %348 = vmatpush2.xpose.msra.mxu0 %v290
        %349 = vmatprep.subr.mxu0 0.0
        %350 = vmatpush2.xpose.msra.mxu0 %v289
        %351 = vmatprep.subr.mxu0 0.0
        %352 = vmatpush2.xpose.msra.mxu0 %v288
        %353 = vmatprep.subr.mxu0 0.0
        %354 = vmatpush2.xpose.msra.mxu0 %v287
        %355 = vmatprep.subr.mxu0 0.0
        %356 = vmatpush2.xpose.msra.mxu0 %v286
        %357 = vmatprep.subr.mxu0 0.0
        %358 = vmatpush2.xpose.msra.mxu0 %v285
        %359 = vmatprep.subr.mxu0 0.0
        %360 = vmatpush2.xpose.msra.mxu0 %v284
        %361 = vmatprep.subr.mxu0 0.0
        %362 = vmatpush2.xpose.msra.mxu0 %v283
        %363 = vmatprep.subr.mxu0 0.0
        %364 = vmatpush2.xpose.msra.mxu0 %v282
        %365 = vmatprep.subr.mxu0 0.0
        %366 = vmatpush2.xpose.msra.mxu0 %v281
        %367 = vmatprep.subr.mxu0 0.0
        %368 = vmatpush2.xpose.msra.mxu0 %v280
        %369 = vmatprep.subr.mxu0 0.0
        %370 = vmatpush2.xpose.msra.mxu0 %v279
        %371 = vmatprep.mubr.f32.mxu0 0.0
        %372 = vmatmul.mubr.f32.gmra.mxu0 %v247
        %v373 = vpop.f32.mrf.mxu0
        %v374 = vadd.f32 %v300, %v373
        %v375 = vpop.f32.mrf.mxu0
        %v376 = vadd.f32 %v304, %v375
        %377 = vmatprep.mubr.f32.mxu0 0.0
        %378 = vmatmul.mubr.f32.gmra.mxu0 %v248
        %v379 = vpop.f32.mrf.mxu0
        %v380 = vadd.f32 %v300, %v379
        %v381 = vpop.f32.mrf.mxu0
        %v382 = vadd.f32 %v304, %v381
        %383 = vmatprep.mubr.f32.mxu0 0.0
        %384 = vmatmul.mubr.f32.gmra.mxu0 %v249
        %v385 = vpop.f32.mrf.mxu0
        %v386 = vadd.f32 %v300, %v385
        %v387 = vpop.f32.mrf.mxu0
        %v388 = vadd.f32 %v304, %v387
        %389 = vmatprep.mubr.f32.mxu0 0.0
        %390 = vmatmul.mubr.f32.gmra.mxu0 %v250
        %v391 = vpop.f32.mrf.mxu0
        %v392 = vadd.f32 %v300, %v391
        %v393 = vpop.f32.mrf.mxu0
        %v394 = vadd.f32 %v304, %v393
        %395 = vmatprep.mubr.f32.mxu0 0.0
        %396 = vmatmul.mubr.f32.gmra.mxu0 %v251
        %v397 = vpop.f32.mrf.mxu0
        %v398 = vadd.f32 %v300, %v397
        %v399 = vpop.f32.mrf.mxu0
        %v400 = vadd.f32 %v304, %v399
        %401 = vmatprep.mubr.f32.mxu0 0.0
        %402 = vmatmul.mubr.f32.gmra.mxu0 %v252
        %v403 = vpop.f32.mrf.mxu0
        %v404 = vadd.f32 %v300, %v403
        %v405 = vpop.f32.mrf.mxu0
        %v406 = vadd.f32 %v304, %v405
        %407 = vmatprep.mubr.f32.mxu0 0.0
        %408 = vmatmul.mubr.f32.gmra.mxu0 %v253
        %v409 = vpop.f32.mrf.mxu0
        %v410 = vadd.f32 %v300, %v409
        %v411 = vpop.f32.mrf.mxu0
        %v412 = vadd.f32 %v304, %v411
        %413 = vmatprep.mubr.f32.mxu0 0.0
        %414 = vmatmul.mubr.f32.gmra.mxu0 %v254
        %v415 = vpop.f32.mrf.mxu0
        %v416 = vadd.f32 %v300, %v415
        %v417 = vpop.f32.mrf.mxu0
        %v418 = vadd.f32 %v304, %v417
        %419 = vmatprep.mubr.f32.mxu0 0.0
        %420 = vmatmul.mubr.f32.gmra.mxu0 %v255
        %v421 = vpop.f32.mrf.mxu0
        %v422 = vadd.f32 %v300, %v421
        %v423 = vpop.f32.mrf.mxu0
        %v424 = vadd.f32 %v304, %v423
        %425 = vmatprep.mubr.f32.mxu0 0.0
        %426 = vmatmul.mubr.f32.gmra.mxu0 %v256
        %v427 = vpop.f32.mrf.mxu0
        %v428 = vadd.f32 %v300, %v427
        %v429 = vpop.f32.mrf.mxu0
        %v430 = vadd.f32 %v304, %v429
        %431 = vmatprep.mubr.f32.mxu0 0.0
        %432 = vmatmul.mubr.f32.gmra.mxu0 %v257
        %v433 = vpop.f32.mrf.mxu0
        %v434 = vadd.f32 %v300, %v433
        %v435 = vpop.f32.mrf.mxu0
        %v436 = vadd.f32 %v304, %v435
        %437 = vmatprep.mubr.f32.mxu0 0.0
        %438 = vmatmul.mubr.f32.gmra.mxu0 %v258
        %v439 = vpop.f32.mrf.mxu0
        %v440 = vadd.f32 %v300, %v439
        %v441 = vpop.f32.mrf.mxu0
        %v442 = vadd.f32 %v304, %v441
        %443 = vmatprep.mubr.f32.mxu0 0.0
        %444 = vmatmul.mubr.f32.gmra.mxu0 %v259
        %v445 = vpop.f32.mrf.mxu0
        %v446 = vadd.f32 %v300, %v445
        %v447 = vpop.f32.mrf.mxu0
        %v448 = vadd.f32 %v304, %v447
        %449 = vmatprep.mubr.f32.mxu0 0.0
        %450 = vmatmul.mubr.f32.gmra.mxu0 %v260
        %v451 = vpop.f32.mrf.mxu0
        %v452 = vadd.f32 %v300, %v451
        %v453 = vpop.f32.mrf.mxu0
        %v454 = vadd.f32 %v304, %v453
        %455 = vmatprep.mubr.f32.mxu0 0.0
        %456 = vmatmul.mubr.f32.gmra.mxu0 %v261
        %v457 = vpop.f32.mrf.mxu0
        %v458 = vadd.f32 %v300, %v457
        %v459 = vpop.f32.mrf.mxu0
        %v460 = vadd.f32 %v304, %v459
        %461 = vmatprep.mubr.f32.mxu0 0.0
        %462 = vmatmul.mubr.f32.gmra.mxu0 %v262
        %v463 = vpop.f32.mrf.mxu0
        %v464 = vadd.f32 %v300, %v463
        %v465 = vpop.f32.mrf.mxu0
        %v466 = vadd.f32 %v304, %v465
        %467 = vdwg.mxu0
        %v468 = vmax.f32 %v374, %v376
        %469 = vmax.xlane.f32.xlu0 %v468
        %v470 = vpop.xlane.xlu0 %469
        %v471 = vmax.f32 %v380, %v382
        %472 = vmax.xlane.f32.xlu0 %v471
        %v473 = vpop.xlane.xlu0 %472
        %v474 = vmax.f32 %v386, %v388
        %475 = vmax.xlane.f32.xlu0 %v474
        %v476 = vpop.xlane.xlu0 %475
        %v477 = vmax.f32 %v392, %v394
        %478 = vmax.xlane.f32.xlu0 %v477
        %v479 = vpop.xlane.xlu0 %478
        %v480 = vmax.f32 %v398, %v400
        %481 = vmax.xlane.f32.xlu0 %v480
        %v482 = vpop.xlane.xlu0 %481
        %v483 = vmax.f32 %v404, %v406
        %484 = vmax.xlane.f32.xlu0 %v483
        %v485 = vpop.xlane.xlu0 %484
        %v486 = vmax.f32 %v410, %v412
        %487 = vmax.xlane.f32.xlu0 %v486
        %v488 = vpop.xlane.xlu0 %487
        %v489 = vmax.f32 %v416, %v418
        %490 = vmax.xlane.f32.xlu0 %v489
        %v491 = vpop.xlane.xlu0 %490
        %v492 = vmax.f32 %v422, %v424
        %493 = vmax.xlane.f32.xlu0 %v492
        %v494 = vpop.xlane.xlu0 %493
        %v495 = vmax.f32 %v428, %v430
        %496 = vmax.xlane.f32.xlu0 %v495
        %v497 = vpop.xlane.xlu0 %496
        %v498 = vmax.f32 %v434, %v436
        %499 = vmax.xlane.f32.xlu0 %v498
        %v500 = vpop.xlane.xlu0 %499
        %v501 = vmax.f32 %v440, %v442
        %502 = vmax.xlane.f32.xlu0 %v501
        %v503 = vpop.xlane.xlu0 %502
        %v504 = vmax.f32 %v446, %v448
        %505 = vmax.xlane.f32.xlu0 %v504
        %v506 = vpop.xlane.xlu0 %505
        %v507 = vmax.f32 %v452, %v454
        %508 = vmax.xlane.f32.xlu0 %v507
        %v509 = vpop.xlane.xlu0 %508
        %v510 = vmax.f32 %v458, %v460
        %511 = vmax.xlane.f32.xlu0 %v510
        %v512 = vpop.xlane.xlu0 %511
        %v513 = vmax.f32 %v464, %v466
        %514 = vmax.xlane.f32.xlu0 %v513
        %v515 = vpop.xlane.xlu0 %514
        %v516 = vlaneseq
        %v517 = vand.u32 %v516, 127
        %v518 = vadd.s32 %v517, 128
        %vm519 = vcmp.eq.f32.partialorder %v374, %v470
        %vm520 = vcmp.eq.f32.partialorder %v376, %v470
        %vm521 = vcmp.eq.f32.partialorder %v380, %v473
        %vm522 = vcmp.eq.f32.partialorder %v382, %v473
        %vm523 = vcmp.eq.f32.partialorder %v386, %v476
        %vm524 = vcmp.eq.f32.partialorder %v388, %v476
        %vm525 = vcmp.eq.f32.partialorder %v392, %v479
        %vm526 = vcmp.eq.f32.partialorder %v394, %v479
        %vm527 = vcmp.eq.f32.partialorder %v398, %v482
        %vm528 = vcmp.eq.f32.partialorder %v400, %v482
        %vm529 = vcmp.eq.f32.partialorder %v404, %v485
        %vm530 = vcmp.eq.f32.partialorder %v406, %v485
        %vm531 = vcmp.eq.f32.partialorder %v410, %v488
        %vm532 = vcmp.eq.f32.partialorder %v412, %v488
        %vm533 = vcmp.eq.f32.partialorder %v416, %v491
        %vm534 = vcmp.eq.f32.partialorder %v418, %v491
        %vm535 = vcmp.eq.f32.partialorder %v422, %v494
        %vm536 = vcmp.eq.f32.partialorder %v424, %v494
        %vm537 = vcmp.eq.f32.partialorder %v428, %v497
        %vm538 = vcmp.eq.f32.partialorder %v430, %v497
        %vm539 = vcmp.eq.f32.partialorder %v434, %v500
        %vm540 = vcmp.eq.f32.partialorder %v436, %v500
        %vm541 = vcmp.eq.f32.partialorder %v440, %v503
        %vm542 = vcmp.eq.f32.partialorder %v442, %v503
        %vm543 = vcmp.eq.f32.partialorder %v446, %v506
        %vm544 = vcmp.eq.f32.partialorder %v448, %v506
        %vm545 = vcmp.eq.f32.partialorder %v452, %v509
        %vm546 = vcmp.eq.f32.partialorder %v454, %v509
        %vm547 = vcmp.eq.f32.partialorder %v458, %v512
        %vm548 = vcmp.eq.f32.partialorder %v460, %v512
        %vm549 = vcmp.eq.f32.partialorder %v464, %v515
        %vm550 = vcmp.eq.f32.partialorder %v466, %v515
        %v551 = vsel %vm519, %v517, 256
        %v552 = vsel %vm520, %v518, 256
        %v553 = vsel %vm521, %v517, 256
        %v554 = vsel %vm522, %v518, 256
        %v555 = vsel %vm523, %v517, 256
        %v556 = vsel %vm524, %v518, 256
        %v557 = vsel %vm525, %v517, 256
        %v558 = vsel %vm526, %v518, 256
        %v559 = vsel %vm527, %v517, 256
        %v560 = vsel %vm528, %v518, 256
        %v561 = vsel %vm529, %v517, 256
        %v562 = vsel %vm530, %v518, 256
        %v563 = vsel %vm531, %v517, 256
        %v564 = vsel %vm532, %v518, 256
        %v565 = vsel %vm533, %v517, 256
        %v566 = vsel %vm534, %v518, 256
        %v567 = vsel %vm535, %v517, 256
        %v568 = vsel %vm536, %v518, 256
        %v569 = vsel %vm537, %v517, 256
        %v570 = vsel %vm538, %v518, 256
        %v571 = vsel %vm539, %v517, 256
        %v572 = vsel %vm540, %v518, 256
        %v573 = vsel %vm541, %v517, 256
        %v574 = vsel %vm542, %v518, 256
        %v575 = vsel %vm543, %v517, 256
        %v576 = vsel %vm544, %v518, 256
        %v577 = vsel %vm545, %v517, 256
        %v578 = vsel %vm546, %v518, 256
        %v579 = vsel %vm547, %v517, 256
        %v580 = vsel %vm548, %v518, 256
        %v581 = vsel %vm549, %v517, 256
        %v582 = vsel %vm550, %v518, 256
        %vm583 = vcmp.lt.s32.totalorder %v551, %v552
        %v584 = vsel %vm583, %v551, %v552
        %v585 = vand.u32 %v584, 65535
        %v586 = vshra.s32 %v584, 16
        %v587 = vcvt.s32.f32 %v585
        %v588 = vcvt.s32.f32 %v586
        %589 = vmin.xlane.f32.xlu0 %v588
        %v590 = vpop.xlane.xlu0 %589
        %vm591 = vcmp.eq.f32.partialorder %v588, %v590
        %v592 = vsel %vm591, %v587, inf
        %593 = vmin.xlane.f32.xlu0 %v592
        %v594 = vpop.xlane.xlu0 %593
        %v595 = vcvt.f32.s32 %v594
        %v596 = vcvt.f32.s32 %v590
        %v597 = vshll.u32 %v596, 16
        %v598 = vadd.s32 %v597, %v595
        %vm599 = vcmp.lt.s32.totalorder %v553, %v554
        %v600 = vsel %vm599, %v553, %v554
        %v601 = vand.u32 %v600, 65535
        %v602 = vshra.s32 %v600, 16
        %v603 = vcvt.s32.f32 %v601
        %v604 = vcvt.s32.f32 %v602
        %605 = vmin.xlane.f32.xlu0 %v604
        %v606 = vpop.xlane.xlu0 %605
        %vm607 = vcmp.eq.f32.partialorder %v604, %v606
        %v608 = vsel %vm607, %v603, inf
        %609 = vmin.xlane.f32.xlu0 %v608
        %v610 = vpop.xlane.xlu0 %609
        %v611 = vcvt.f32.s32 %v610
        %v612 = vcvt.f32.s32 %v606
        %v613 = vshll.u32 %v612, 16
        %v614 = vadd.s32 %v613, %v611
        %vm615 = vcmp.lt.s32.totalorder %v555, %v556
        %v616 = vsel %vm615, %v555, %v556
        %v617 = vand.u32 %v616, 65535
        %v618 = vshra.s32 %v616, 16
        %v619 = vcvt.s32.f32 %v617
        %v620 = vcvt.s32.f32 %v618
        %621 = vmin.xlane.f32.xlu0 %v620
        %v622 = vpop.xlane.xlu0 %621
        %vm623 = vcmp.eq.f32.partialorder %v620, %v622
        %v624 = vsel %vm623, %v619, inf
        %625 = vmin.xlane.f32.xlu0 %v624
        %v626 = vpop.xlane.xlu0 %625
        %v627 = vcvt.f32.s32 %v626
        %v628 = vcvt.f32.s32 %v622
        %v629 = vshll.u32 %v628, 16
        %v630 = vadd.s32 %v629, %v627
        %vm631 = vcmp.lt.s32.totalorder %v557, %v558
        %v632 = vsel %vm631, %v557, %v558
        %v633 = vand.u32 %v632, 65535
        %v634 = vshra.s32 %v632, 16
        %v635 = vcvt.s32.f32 %v633
        %v636 = vcvt.s32.f32 %v634
        %637 = vmin.xlane.f32.xlu0 %v636
        %v638 = vpop.xlane.xlu0 %637
        %vm639 = vcmp.eq.f32.partialorder %v636, %v638
        %v640 = vsel %vm639, %v635, inf
        %641 = vmin.xlane.f32.xlu0 %v640
        %v642 = vpop.xlane.xlu0 %641
        %v643 = vcvt.f32.s32 %v642
        %v644 = vcvt.f32.s32 %v638
        %v645 = vshll.u32 %v644, 16
        %v646 = vadd.s32 %v645, %v643
        %vm647 = vcmp.lt.s32.totalorder %v559, %v560
        %v648 = vsel %vm647, %v559, %v560
        %v649 = vand.u32 %v648, 65535
        %v650 = vshra.s32 %v648, 16
        %v651 = vcvt.s32.f32 %v649
        %v652 = vcvt.s32.f32 %v650
        %653 = vmin.xlane.f32.xlu0 %v652
        %v654 = vpop.xlane.xlu0 %653
        %vm655 = vcmp.eq.f32.partialorder %v652, %v654
        %v656 = vsel %vm655, %v651, inf
        %657 = vmin.xlane.f32.xlu0 %v656
        %v658 = vpop.xlane.xlu0 %657
        %v659 = vcvt.f32.s32 %v658
        %v660 = vcvt.f32.s32 %v654
        %v661 = vshll.u32 %v660, 16
        %v662 = vadd.s32 %v661, %v659
        %vm663 = vcmp.lt.s32.totalorder %v561, %v562
        %v664 = vsel %vm663, %v561, %v562
        %v665 = vand.u32 %v664, 65535
        %v666 = vshra.s32 %v664, 16
        %v667 = vcvt.s32.f32 %v665
        %v668 = vcvt.s32.f32 %v666
        %669 = vmin.xlane.f32.xlu0 %v668
        %v670 = vpop.xlane.xlu0 %669
        %vm671 = vcmp.eq.f32.partialorder %v668, %v670
        %v672 = vsel %vm671, %v667, inf
        %673 = vmin.xlane.f32.xlu0 %v672
        %v674 = vpop.xlane.xlu0 %673
        %v675 = vcvt.f32.s32 %v674
        %v676 = vcvt.f32.s32 %v670
        %v677 = vshll.u32 %v676, 16
        %v678 = vadd.s32 %v677, %v675
        %vm679 = vcmp.lt.s32.totalorder %v563, %v564
        %v680 = vsel %vm679, %v563, %v564
        %v681 = vand.u32 %v680, 65535
        %v682 = vshra.s32 %v680, 16
        %v683 = vcvt.s32.f32 %v681
        %v684 = vcvt.s32.f32 %v682
        %685 = vmin.xlane.f32.xlu0 %v684
        %v686 = vpop.xlane.xlu0 %685
        %vm687 = vcmp.eq.f32.partialorder %v684, %v686
        %v688 = vsel %vm687, %v683, inf
        %689 = vmin.xlane.f32.xlu0 %v688
        %v690 = vpop.xlane.xlu0 %689
        %v691 = vcvt.f32.s32 %v690
        %v692 = vcvt.f32.s32 %v686
        %v693 = vshll.u32 %v692, 16
        %v694 = vadd.s32 %v693, %v691
        %vm695 = vcmp.lt.s32.totalorder %v565, %v566
        %v696 = vsel %vm695, %v565, %v566
        %v697 = vand.u32 %v696, 65535
        %v698 = vshra.s32 %v696, 16
        %v699 = vcvt.s32.f32 %v697
        %v700 = vcvt.s32.f32 %v698
        %701 = vmin.xlane.f32.xlu0 %v700
        %v702 = vpop.xlane.xlu0 %701
        %vm703 = vcmp.eq.f32.partialorder %v700, %v702
        %v704 = vsel %vm703, %v699, inf
        %705 = vmin.xlane.f32.xlu0 %v704
        %v706 = vpop.xlane.xlu0 %705
        %v707 = vcvt.f32.s32 %v706
        %v708 = vcvt.f32.s32 %v702
        %v709 = vshll.u32 %v708, 16
        %v710 = vadd.s32 %v709, %v707
        %vm711 = vcmp.lt.s32.totalorder %v567, %v568
        %v712 = vsel %vm711, %v567, %v568
        %v713 = vand.u32 %v712, 65535
        %v714 = vshra.s32 %v712, 16
        %v715 = vcvt.s32.f32 %v713
        %v716 = vcvt.s32.f32 %v714
        %717 = vmin.xlane.f32.xlu0 %v716
        %v718 = vpop.xlane.xlu0 %717
        %vm719 = vcmp.eq.f32.partialorder %v716, %v718
        %v720 = vsel %vm719, %v715, inf
        %721 = vmin.xlane.f32.xlu0 %v720
        %v722 = vpop.xlane.xlu0 %721
        %v723 = vcvt.f32.s32 %v722
        %v724 = vcvt.f32.s32 %v718
        %v725 = vshll.u32 %v724, 16
        %v726 = vadd.s32 %v725, %v723
        %vm727 = vcmp.lt.s32.totalorder %v569, %v570
        %v728 = vsel %vm727, %v569, %v570
        %v729 = vand.u32 %v728, 65535
        %v730 = vshra.s32 %v728, 16
        %v731 = vcvt.s32.f32 %v729
        %v732 = vcvt.s32.f32 %v730
        %733 = vmin.xlane.f32.xlu0 %v732
        %v734 = vpop.xlane.xlu0 %733
        %vm735 = vcmp.eq.f32.partialorder %v732, %v734
        %v736 = vsel %vm735, %v731, inf
        %737 = vmin.xlane.f32.xlu0 %v736
        %v738 = vpop.xlane.xlu0 %737
        %v739 = vcvt.f32.s32 %v738
        %v740 = vcvt.f32.s32 %v734
        %v741 = vshll.u32 %v740, 16
        %v742 = vadd.s32 %v741, %v739
        %vm743 = vcmp.lt.s32.totalorder %v571, %v572
        %v744 = vsel %vm743, %v571, %v572
        %v745 = vand.u32 %v744, 65535
        %v746 = vshra.s32 %v744, 16
        %v747 = vcvt.s32.f32 %v745
        %v748 = vcvt.s32.f32 %v746
        %749 = vmin.xlane.f32.xlu0 %v748
        %v750 = vpop.xlane.xlu0 %749
        %vm751 = vcmp.eq.f32.partialorder %v748, %v750
        %v752 = vsel %vm751, %v747, inf
        %753 = vmin.xlane.f32.xlu0 %v752
        %v754 = vpop.xlane.xlu0 %753
        %v755 = vcvt.f32.s32 %v754
        %v756 = vcvt.f32.s32 %v750
        %v757 = vshll.u32 %v756, 16
        %v758 = vadd.s32 %v757, %v755
        %vm759 = vcmp.lt.s32.totalorder %v573, %v574
        %v760 = vsel %vm759, %v573, %v574
        %v761 = vand.u32 %v760, 65535
        %v762 = vshra.s32 %v760, 16
        %v763 = vcvt.s32.f32 %v761
        %v764 = vcvt.s32.f32 %v762
        %765 = vmin.xlane.f32.xlu0 %v764
        %v766 = vpop.xlane.xlu0 %765
        %vm767 = vcmp.eq.f32.partialorder %v764, %v766
        %v768 = vsel %vm767, %v763, inf
        %769 = vmin.xlane.f32.xlu0 %v768
        %v770 = vpop.xlane.xlu0 %769
        %v771 = vcvt.f32.s32 %v770
        %v772 = vcvt.f32.s32 %v766
        %v773 = vshll.u32 %v772, 16
        %v774 = vadd.s32 %v773, %v771
        %vm775 = vcmp.lt.s32.totalorder %v575, %v576
        %v776 = vsel %vm775, %v575, %v576
        %v777 = vand.u32 %v776, 65535
        %v778 = vshra.s32 %v776, 16
        %v779 = vcvt.s32.f32 %v777
        %v780 = vcvt.s32.f32 %v778
        %781 = vmin.xlane.f32.xlu0 %v780
        %v782 = vpop.xlane.xlu0 %781
        %vm783 = vcmp.eq.f32.partialorder %v780, %v782
        %v784 = vsel %vm783, %v779, inf
        %785 = vmin.xlane.f32.xlu0 %v784
        %v786 = vpop.xlane.xlu0 %785
        %v787 = vcvt.f32.s32 %v786
        %v788 = vcvt.f32.s32 %v782
        %v789 = vshll.u32 %v788, 16
        %v790 = vadd.s32 %v789, %v787
        %vm791 = vcmp.lt.s32.totalorder %v577, %v578
        %v792 = vsel %vm791, %v577, %v578
        %v793 = vand.u32 %v792, 65535
        %v794 = vshra.s32 %v792, 16
        %v795 = vcvt.s32.f32 %v793
        %v796 = vcvt.s32.f32 %v794
        %797 = vmin.xlane.f32.xlu0 %v796
        %v798 = vpop.xlane.xlu0 %797
        %vm799 = vcmp.eq.f32.partialorder %v796, %v798
        %v800 = vsel %vm799, %v795, inf
        %801 = vmin.xlane.f32.xlu0 %v800
        %v802 = vpop.xlane.xlu0 %801
        %v803 = vcvt.f32.s32 %v802
        %v804 = vcvt.f32.s32 %v798
        %v805 = vshll.u32 %v804, 16
        %v806 = vadd.s32 %v805, %v803
        %vm807 = vcmp.lt.s32.totalorder %v579, %v580
        %v808 = vsel %vm807, %v579, %v580
        %v809 = vand.u32 %v808, 65535
        %v810 = vshra.s32 %v808, 16
        %v811 = vcvt.s32.f32 %v809
        %v812 = vcvt.s32.f32 %v810
        %813 = vmin.xlane.f32.xlu0 %v812
        %v814 = vpop.xlane.xlu0 %813
        %vm815 = vcmp.eq.f32.partialorder %v812, %v814
        %v816 = vsel %vm815, %v811, inf
        %817 = vmin.xlane.f32.xlu0 %v816
        %v818 = vpop.xlane.xlu0 %817
        %v819 = vcvt.f32.s32 %v818
        %v820 = vcvt.f32.s32 %v814
        %v821 = vshll.u32 %v820, 16
        %v822 = vadd.s32 %v821, %v819
        %vm823 = vcmp.lt.s32.totalorder %v581, %v582
        %v824 = vsel %vm823, %v581, %v582
        %v825 = vand.u32 %v824, 65535
        %v826 = vshra.s32 %v824, 16
        %v827 = vcvt.s32.f32 %v825
        %v828 = vcvt.s32.f32 %v826
        %829 = vmin.xlane.f32.xlu0 %v828
        %v830 = vpop.xlane.xlu0 %829
        %vm831 = vcmp.eq.f32.partialorder %v828, %v830
        %v832 = vsel %vm831, %v827, inf
        %833 = vmin.xlane.f32.xlu0 %v832
        %v834 = vpop.xlane.xlu0 %833
        %v835 = vcvt.f32.s32 %v834
        %v836 = vcvt.f32.s32 %v830
        %v837 = vshll.u32 %v836, 16
        %v838 = vadd.s32 %v837, %v835
        %vm839 = vcmp.eq.s32.totalorder %v517, %v598
        %vm840 = vcmp.eq.s32.totalorder %v518, %v598
        %vm841 = vcmp.eq.s32.totalorder %v517, %v614
        %vm842 = vcmp.eq.s32.totalorder %v518, %v614
        %vm843 = vcmp.eq.s32.totalorder %v517, %v630
        %vm844 = vcmp.eq.s32.totalorder %v518, %v630
        %vm845 = vcmp.eq.s32.totalorder %v517, %v646
        %vm846 = vcmp.eq.s32.totalorder %v518, %v646
        %vm847 = vcmp.eq.s32.totalorder %v517, %v662
        %vm848 = vcmp.eq.s32.totalorder %v518, %v662
        %vm849 = vcmp.eq.s32.totalorder %v517, %v678
        %vm850 = vcmp.eq.s32.totalorder %v518, %v678
        %vm851 = vcmp.eq.s32.totalorder %v517, %v694
        %vm852 = vcmp.eq.s32.totalorder %v518, %v694
        %vm853 = vcmp.eq.s32.totalorder %v517, %v710
        %vm854 = vcmp.eq.s32.totalorder %v518, %v710
        %vm855 = vcmp.eq.s32.totalorder %v517, %v726
        %vm856 = vcmp.eq.s32.totalorder %v518, %v726
        %vm857 = vcmp.eq.s32.totalorder %v517, %v742
        %vm858 = vcmp.eq.s32.totalorder %v518, %v742
        %vm859 = vcmp.eq.s32.totalorder %v517, %v758
        %vm860 = vcmp.eq.s32.totalorder %v518, %v758
        %vm861 = vcmp.eq.s32.totalorder %v517, %v774
        %vm862 = vcmp.eq.s32.totalorder %v518, %v774
        %vm863 = vcmp.eq.s32.totalorder %v517, %v790
        %vm864 = vcmp.eq.s32.totalorder %v518, %v790
        %vm865 = vcmp.eq.s32.totalorder %v517, %v806
        %vm866 = vcmp.eq.s32.totalorder %v518, %v806
        %vm867 = vcmp.eq.s32.totalorder %v517, %v822
        %vm868 = vcmp.eq.s32.totalorder %v518, %v822
        %vm869 = vcmp.eq.s32.totalorder %v517, %v838
        %vm870 = vcmp.eq.s32.totalorder %v518, %v838
        %v871 = vsel %vm839, 1, 0
        %v872 = vsel %vm840, 1, 0
        %v873 = vsel %vm841, 1, 0
        %v874 = vsel %vm842, 1, 0
        %v875 = vsel %vm843, 1, 0
        %v876 = vsel %vm844, 1, 0
        %v877 = vsel %vm845, 1, 0
        %v878 = vsel %vm846, 1, 0
        %v879 = vsel %vm847, 1, 0
        %v880 = vsel %vm848, 1, 0
        %v881 = vsel %vm849, 1, 0
        %v882 = vsel %vm850, 1, 0
        %v883 = vsel %vm851, 1, 0
        %v884 = vsel %vm852, 1, 0
        %v885 = vsel %vm853, 1, 0
        %v886 = vsel %vm854, 1, 0
        %v887 = vsel %vm855, 1, 0
        %v888 = vsel %vm856, 1, 0
        %v889 = vsel %vm857, 1, 0
        %v890 = vsel %vm858, 1, 0
        %v891 = vsel %vm859, 1, 0
        %v892 = vsel %vm860, 1, 0
        %v893 = vsel %vm861, 1, 0
        %v894 = vsel %vm862, 1, 0
        %v895 = vsel %vm863, 1, 0
        %v896 = vsel %vm864, 1, 0
        %v897 = vsel %vm865, 1, 0
        %v898 = vsel %vm866, 1, 0
        %v899 = vsel %vm867, 1, 0
        %v900 = vsel %vm868, 1, 0
        %v901 = vsel %vm869, 1, 0
        %v902 = vsel %vm870, 1, 0
        %v903 = vcvt.s32.f32 %v871
        %v904 = vcvt.s32.f32 %v872
        %v905 = vcvt.s32.f32 %v873
        %v906 = vcvt.s32.f32 %v874
        %v907 = vcvt.s32.f32 %v875
        %v908 = vcvt.s32.f32 %v876
        %v909 = vcvt.s32.f32 %v877
        %v910 = vcvt.s32.f32 %v878
        %v911 = vcvt.s32.f32 %v879
        %v912 = vcvt.s32.f32 %v880
        %v913 = vcvt.s32.f32 %v881
        %v914 = vcvt.s32.f32 %v882
        %v915 = vcvt.s32.f32 %v883
        %v916 = vcvt.s32.f32 %v884
        %v917 = vcvt.s32.f32 %v885
        %v918 = vcvt.s32.f32 %v886
        %v919 = vcvt.s32.f32 %v887
        %v920 = vcvt.s32.f32 %v888
        %v921 = vcvt.s32.f32 %v889
        %v922 = vcvt.s32.f32 %v890
        %v923 = vcvt.s32.f32 %v891
        %v924 = vcvt.s32.f32 %v892
        %v925 = vcvt.s32.f32 %v893
        %v926 = vcvt.s32.f32 %v894
        %v927 = vcvt.s32.f32 %v895
        %v928 = vcvt.s32.f32 %v896
        %v929 = vcvt.s32.f32 %v897
        %v930 = vcvt.s32.f32 %v898
        %v931 = vcvt.s32.f32 %v899
        %v932 = vcvt.s32.f32 %v900
        %v933 = vcvt.s32.f32 %v901
        %v934 = vcvt.s32.f32 %v902
        %935 = vmatprep.subr.mxu0 0.0
        %936 = vmatpush1.msra.mxu0 %v278
        %937 = vmatprep.subr.mxu0 0.0
        %938 = vmatpush1.msra.mxu0 %v277
        %939 = vmatprep.subr.mxu0 0.0
        %940 = vmatpush1.msra.mxu0 %v276
        %941 = vmatprep.subr.mxu0 0.0
        %942 = vmatpush1.msra.mxu0 %v275
        %943 = vmatprep.subr.mxu0 0.0
        %944 = vmatpush1.msra.mxu0 %v274
        %945 = vmatprep.subr.mxu0 0.0
        %946 = vmatpush1.msra.mxu0 %v273
        %947 = vmatprep.subr.mxu0 0.0
        %948 = vmatpush1.msra.mxu0 %v272
        %949 = vmatprep.subr.mxu0 0.0
        %950 = vmatpush1.msra.mxu0 %v271
        %951 = vmatprep.subr.mxu0 0.0
        %952 = vmatpush1.msra.mxu0 %v270
        %953 = vmatprep.subr.mxu0 0.0
        %954 = vmatpush1.msra.mxu0 %v269
        %955 = vmatprep.subr.mxu0 0.0
        %956 = vmatpush1.msra.mxu0 %v268
        %957 = vmatprep.subr.mxu0 0.0
        %958 = vmatpush1.msra.mxu0 %v267
        %959 = vmatprep.subr.mxu0 0.0
        %960 = vmatpush1.msra.mxu0 %v266
        %961 = vmatprep.subr.mxu0 0.0
        %962 = vmatpush1.msra.mxu0 %v265
        %963 = vmatprep.subr.mxu0 0.0
        %964 = vmatpush1.msra.mxu0 %v264
        %965 = vmatprep.subr.mxu0 0.0
        %966 = vmatpush1.msra.mxu0 %v263
        %967 = vmatprep.subr.mxu0 0.0
        %968 = vmatpush2.msra.mxu0 %v294
        %969 = vmatprep.subr.mxu0 0.0
        %970 = vmatpush2.msra.mxu0 %v293
        %971 = vmatprep.subr.mxu0 0.0
        %972 = vmatpush2.msra.mxu0 %v292
        %973 = vmatprep.subr.mxu0 0.0
        %974 = vmatpush2.msra.mxu0 %v291
        %975 = vmatprep.subr.mxu0 0.0
        %976 = vmatpush2.msra.mxu0 %v290
        %977 = vmatprep.subr.mxu0 0.0
        %978 = vmatpush2.msra.mxu0 %v289
        %979 = vmatprep.subr.mxu0 0.0
        %980 = vmatpush2.msra.mxu0 %v288
        %981 = vmatprep.subr.mxu0 0.0
        %982 = vmatpush2.msra.mxu0 %v287
        %983 = vmatprep.subr.mxu0 0.0
        %984 = vmatpush2.msra.mxu0 %v286
        %985 = vmatprep.subr.mxu0 0.0
        %986 = vmatpush2.msra.mxu0 %v285
        %987 = vmatprep.subr.mxu0 0.0
        %988 = vmatpush2.msra.mxu0 %v284
        %989 = vmatprep.subr.mxu0 0.0
        %990 = vmatpush2.msra.mxu0 %v283
        %991 = vmatprep.subr.mxu0 0.0
        %992 = vmatpush2.msra.mxu0 %v282
        %993 = vmatprep.subr.mxu0 0.0
        %994 = vmatpush2.msra.mxu0 %v281
        %995 = vmatprep.subr.mxu0 0.0
        %996 = vmatpush2.msra.mxu0 %v280
        %997 = vmatprep.subr.mxu0 0.0
        %998 = vmatpush2.msra.mxu0 %v279
        %999 = vmatprep.mubr.f32.mxu0 %v904
        %1000 = vmatmul.mubr.f32.gmra.mxu0 %v903
        %v1001 = vpop.f32.mrf.mxu0
        %v1002 = vadd.f32 0.0, %v1001
        %v1003 = vpop.f32.mrf.mxu0
        %1004 = vmatprep.mubr.f32.mxu0 %v906
        %1005 = vmatmul.mubr.f32.gmra.mxu0 %v905
        %v1006 = vpop.f32.mrf.mxu0
        %v1007 = vadd.f32 0.0, %v1006
        %v1008 = vpop.f32.mrf.mxu0
        %1009 = vmatprep.mubr.f32.mxu0 %v908
        %1010 = vmatmul.mubr.f32.gmra.mxu0 %v907
        %v1011 = vpop.f32.mrf.mxu0
        %v1012 = vadd.f32 0.0, %v1011
        %v1013 = vpop.f32.mrf.mxu0
        %1014 = vmatprep.mubr.f32.mxu0 %v910
        %1015 = vmatmul.mubr.f32.gmra.mxu0 %v909
        %v1016 = vpop.f32.mrf.mxu0
        %v1017 = vadd.f32 0.0, %v1016
        %v1018 = vpop.f32.mrf.mxu0
        %1019 = vmatprep.mubr.f32.mxu0 %v912
        %1020 = vmatmul.mubr.f32.gmra.mxu0 %v911
        %v1021 = vpop.f32.mrf.mxu0
        %v1022 = vadd.f32 0.0, %v1021
        %v1023 = vpop.f32.mrf.mxu0
        %1024 = vmatprep.mubr.f32.mxu0 %v914
        %1025 = vmatmul.mubr.f32.gmra.mxu0 %v913
        %v1026 = vpop.f32.mrf.mxu0
        %v1027 = vadd.f32 0.0, %v1026
        %v1028 = vpop.f32.mrf.mxu0
        %1029 = vmatprep.mubr.f32.mxu0 %v916
        %1030 = vmatmul.mubr.f32.gmra.mxu0 %v915
        %v1031 = vpop.f32.mrf.mxu0
        %v1032 = vadd.f32 0.0, %v1031
        %v1033 = vpop.f32.mrf.mxu0
        %1034 = vmatprep.mubr.f32.mxu0 %v918
        %1035 = vmatmul.mubr.f32.gmra.mxu0 %v917
        %v1036 = vpop.f32.mrf.mxu0
        %v1037 = vadd.f32 0.0, %v1036
        %v1038 = vpop.f32.mrf.mxu0
        %1039 = vmatprep.mubr.f32.mxu0 %v920
        %1040 = vmatmul.mubr.f32.gmra.mxu0 %v919
        %v1041 = vpop.f32.mrf.mxu0
        %v1042 = vadd.f32 0.0, %v1041
        %v1043 = vpop.f32.mrf.mxu0
        %1044 = vmatprep.mubr.f32.mxu0 %v922
        %1045 = vmatmul.mubr.f32.gmra.mxu0 %v921
        %v1046 = vpop.f32.mrf.mxu0
        %v1047 = vadd.f32 0.0, %v1046
        %v1048 = vpop.f32.mrf.mxu0
        %1049 = vmatprep.mubr.f32.mxu0 %v924
        %1050 = vmatmul.mubr.f32.gmra.mxu0 %v923
        %v1051 = vpop.f32.mrf.mxu0
        %v1052 = vadd.f32 0.0, %v1051
        %v1053 = vpop.f32.mrf.mxu0
        %1054 = vmatprep.mubr.f32.mxu0 %v926
        %1055 = vmatmul.mubr.f32.gmra.mxu0 %v925
        %v1056 = vpop.f32.mrf.mxu0
        %v1057 = vadd.f32 0.0, %v1056
        %v1058 = vpop.f32.mrf.mxu0
        %1059 = vmatprep.mubr.f32.mxu0 %v928
        %1060 = vmatmul.mubr.f32.gmra.mxu0 %v927
        %v1061 = vpop.f32.mrf.mxu0
        %v1062 = vadd.f32 0.0, %v1061
        %v1063 = vpop.f32.mrf.mxu0
        %1064 = vmatprep.mubr.f32.mxu0 %v930
        %1065 = vmatmul.mubr.f32.gmra.mxu0 %v929
        %v1066 = vpop.f32.mrf.mxu0
        %v1067 = vadd.f32 0.0, %v1066
        %v1068 = vpop.f32.mrf.mxu0
        %1069 = vmatprep.mubr.f32.mxu0 %v932
        %1070 = vmatmul.mubr.f32.gmra.mxu0 %v931
        %v1071 = vpop.f32.mrf.mxu0
        %v1072 = vadd.f32 0.0, %v1071
        %v1073 = vpop.f32.mrf.mxu0
        %1074 = vmatprep.mubr.f32.mxu0 %v934
        %1075 = vmatmul.mubr.f32.gmra.mxu0 %v933
        %v1076 = vpop.f32.mrf.mxu0
        %v1077 = vadd.f32 0.0, %v1076
        %v1078 = vpop.f32.mrf.mxu0
        %1079 = vdwg.mxu0
        %1080 = vst [vmem:[%s231] sm:$0xff] %v1002
        %1081 = vst [vmem:[%s231 + $0x8] sm:$0xff] %v1007
        %1082 = vst [vmem:[%s231 + $0x10] sm:$0xff] %v1012
        %1083 = vst [vmem:[%s231 + $0x18] sm:$0xff] %v1017
        %1084 = vst [vmem:[%s231 + $0x20] sm:$0xff] %v1022
        %1085 = vst [vmem:[%s231 + $0x28] sm:$0xff] %v1027
        %1086 = vst [vmem:[%s231 + $0x30] sm:$0xff] %v1032
        %1087 = vst [vmem:[%s231 + $0x38] sm:$0xff] %v1037
        %1088 = vst [vmem:[%s231 + $0x40] sm:$0xff] %v1042
        %1089 = vst [vmem:[%s231 + $0x48] sm:$0xff] %v1047
        %1090 = vst [vmem:[%s231 + $0x50] sm:$0xff] %v1052
        %1091 = vst [vmem:[%s231 + $0x58] sm:$0xff] %v1057
        %1092 = vst [vmem:[%s231 + $0x60] sm:$0xff] %v1062
        %1093 = vst [vmem:[%s231 + $0x68] sm:$0xff] %v1067
        %1094 = vst [vmem:[%s231 + $0x70] sm:$0xff] %v1072
        %1095 = vst [vmem:[%s231 + $0x78] sm:$0xff] %v1077
        %vm1096 = vcmask 7168
        %1097 = vst.msk [vmem:[%s245] sm:$0xff] %vm1096, %v598
        %1098 = vst.msk [vmem:[%s245 + $0x8] sm:$0xff] %vm1096, %v614
        %1099 = vst.msk [vmem:[%s245 + $0x10] sm:$0xff] %vm1096, %v630
        %1100 = vst.msk [vmem:[%s245 + $0x18] sm:$0xff] %vm1096, %v646
        %1101 = vst.msk [vmem:[%s245 + $0x20] sm:$0xff] %vm1096, %v662
        %1102 = vst.msk [vmem:[%s245 + $0x28] sm:$0xff] %vm1096, %v678
        %1103 = vst.msk [vmem:[%s245 + $0x30] sm:$0xff] %vm1096, %v694
        %1104 = vst.msk [vmem:[%s245 + $0x38] sm:$0xff] %vm1096, %v710
        %1105 = vst.msk [vmem:[%s245 + $0x40] sm:$0xff] %vm1096, %v726
        %1106 = vst.msk [vmem:[%s245 + $0x48] sm:$0xff] %vm1096, %v742
        %1107 = vst.msk [vmem:[%s245 + $0x50] sm:$0xff] %vm1096, %v758
        %1108 = vst.msk [vmem:[%s245 + $0x58] sm:$0xff] %vm1096, %v774
        %1109 = vst.msk [vmem:[%s245 + $0x60] sm:$0xff] %vm1096, %v790
        %1110 = vst.msk [vmem:[%s245 + $0x68] sm:$0xff] %vm1096, %v806
        %1111 = vst.msk [vmem:[%s245 + $0x70] sm:$0xff] %vm1096, %v822
        %1112 = vst.msk [vmem:[%s245 + $0x78] sm:$0xff] %vm1096, %v838
        %s1113 = sand.u32 %s99, 1
        %s1114 = scalar_lea.sflag [#allocation4], %s1113
        %s1115 = sand.u32 %s99, 1
        %s1116 = smul.addr %s1115, 128
        %s1117 = scalar_lea.vmem [#allocation7], %s1116
        %s1118 = smul.u32 16, %s23
        %p1119 = scmp.lt.s32.totalorder %s1118, 31
        %s1120 = scalar_select %p1119, %s1118, 31
        %s1121 = smul.addr %s1120, 8
        %s1122 = scalar_lea.vmem %s4, %s1121
        // Predicated region
        $region41: #{tpu_custom_call.1} parent=31 // pred_check
          %p1123 = pneg %p109
        $region42: #{tpu_custom_call.1} parent=31 // pred_check_branch
          %1125 = sbr.rel (%p1123) target = $region44
        $region43: #{tpu_custom_call.1} parent=31 // pred_region
          %s1126 = smul.u32 16, %s23
          %s1128 = ssub.s32 2048, 2048
          %1129 = vsyncadd %s1114, %s1128
          %s1130 = smul.addr %s1126, 128
          %s1131 = scalar_lea.hbm %s3, %s1130
          %s1132 = sshll.u32 %s1117, 4
          %s1133 = int_to_ptr.vmem [resolvable:$true] %s1132
          %1138 = dma.vmem_to_hbm [thread:$0]  %s1133, 2048, %s1131, %s1114, 128, 128, 8
        $region44: #{tpu_custom_call.1} parent=31 // pred_fallthru
          _
        // Predicated region
        $region45: #{tpu_custom_call.1} parent=31 // pred_check
          %p1139 = pneg %p135
        $region46: #{tpu_custom_call.1} parent=31 // pred_check_branch
          %1141 = sbr.rel (%p1139) target = $region48
        $region47: #{tpu_custom_call.1} parent=31 // pred_region
          %s1142 = smul.u32 16, %s23
        $region48: #{tpu_custom_call.1} parent=31 // pred_fallthru
          _
      $region32: #{tpu_custom_call.1} parent=5 // pred_fallthru
        _
      %p1143 = scmp.le.s32.totalorder 2, %s18
      // Predicated region
      $region49: #{tpu_custom_call.1} parent=5 // pred_check
        %p1144 = pneg %p1143
      $region50: #{tpu_custom_call.1} parent=5 // pred_check_branch
        %1146 = sbr.rel (%p1144) target = $region52
      $region51: #{tpu_custom_call.1} parent=5 // pred_region
        %s1147 = ssub.s32 %s18, 2
        // Predicated region
        $region53: #{tpu_custom_call.1} parent=51 // pred_check
          %p1148 = pneg %p115
        $region54: #{tpu_custom_call.1} parent=51 // pred_check_branch
          %1150 = sbr.rel (%p1148) target = $region56
        $region55: #{tpu_custom_call.1} parent=51 // pred_region
          %s1151 = sand.u32 %s100, 1
          %s1152 = scalar_lea.sflag [#allocation4], %s1151
          %s1153 = sand.u32 %s100, 1
          %s1154 = smul.addr %s1153, 128
          %s1155 = scalar_lea.vmem [#allocation7], %s1154
          %1156 = dma.done %s1152, 2048
        $region56: #{tpu_custom_call.1} parent=51 // pred_fallthru
          _
        // Predicated region
        $region57: #{tpu_custom_call.1} parent=51 // pred_check
          %p1157 = pneg %p141
        $region58: #{tpu_custom_call.1} parent=51 // pred_check_branch
          %1159 = sbr.rel (%p1157) target = $region60
        $region59: #{tpu_custom_call.1} parent=51 // pred_region
          %s1160 = smul.u32 16, %s24
          %p1161 = scmp.lt.s32.totalorder %s1160, 31
          %s1162 = scalar_select %p1161, %s1160, 31
          %s1163 = smul.addr %s1162, 8
          %s1164 = scalar_lea.vmem %s4, %s1163
        $region60: #{tpu_custom_call.1} parent=51 // pred_fallthru
          _
      $region52: #{tpu_custom_call.1} parent=5 // pred_fallthru
        _
    $region6: #{tpu_custom_call.1} parent=1 // loop_footer
      %s22 = sadd.s32 1, %s18
    $region7: #{tpu_custom_call.1} parent=1 // loop_footer_branch
      %17 = sbr.rel target = $region3
    $region8: #{tpu_custom_call.1} parent=1 // loop_exit
      _
    %1165 = vsyncpa [#allocation3], 1
    %s1166 = scalar_lea.sflag [#allocation3], 1
    %1167 = vsyncpa %s1166, 1
    %1168 = vsyncpa [#allocation6], 1
    %1169 = vsyncpa [#allocation4], 1
    %s1170 = scalar_lea.sflag [#allocation4], 1
    %1171 = vsyncpa %s1170, 1

</llo_original>
